<compile_context>
chip_gen: v7x
topology: tpu7x:2x2x1
jax: 0.10.0
libtpu: 0.0.40
codegen_flags: <defaults>
</compile_context>

<pallas_src>
import jax
import jax.numpy as jnp
from jax.experimental import pallas as pl
from jax.experimental.pallas import tpu as pltpu

N_FEATURES = 32   # small synthetic feature size (module arg n_features)
HIDDEN = 30       # fixed by the module (nn.Linear(n_features, 30))

LANE = 128        # TPU lane width (last-dim tile)
SUBLANE = 8       # TPU sublane count (second-to-last-dim tile)
B_TILE = 128      # batch columns per grid step (one full lane tile / MXU pass)


def _round_up(x, m):
    return (x + m - 1) // m * m


def _critic_kernel(s_ref, w1_ref, w2_ref, out_ref):
    # s_ref   : (F_PAD, B_TILE)  feature-major padded states; row F_BIAS == 1.0
    # w1_ref  : (H_PAD, F_PAD)   W1 with b1 folded into column F_BIAS,
    #                            row HIDDEN == bias-channel (1 at F_BIAS)
    # w2_ref  : (SUBLANE, H_PAD) W2 row (with b2 at column HIDDEN) replicated
    #                            over 8 sublanes
    # out_ref : (SUBLANE, B_TILE) value per batch column, replicated over the
    #                            8 sublanes (wrapper reads sublane 0)

    # Hidden layer: one full 128x128x128 MXU pass, bias folded in, then ReLU.
    h = jnp.dot(w1_ref[...], s_ref[...], preferred_element_type=jnp.float32)
    h = jnp.maximum(h, 0.0)

    # Value head: tiny second MXU pass (b2 rides on the always-1 hidden
    # channel).  Result is already the (8, B_TILE) replicated output tile.
    out_ref[...] = jnp.dot(w2_ref[...], h, preferred_element_type=jnp.float32)


def critic_forward_batched(states, w1, b1, w2, b2):
    """Batched Critic forward.

    Args:
      states: (B, n_features) f32.
      w1: (30, n_features), b1: (30,), w2: (1, 30), b2: (1,)  (PyTorch layout).
    Returns:
      (B, 1) f32 value estimates.
    """
    states = jnp.asarray(states, jnp.float32)
    w1 = jnp.asarray(w1, jnp.float32)
    b1 = jnp.asarray(b1, jnp.float32)
    w2 = jnp.asarray(w2, jnp.float32)
    b2 = jnp.asarray(b2, jnp.float32)

    B, F = states.shape
    H = w1.shape[0]
    F_BIAS = F                                  # index of the constant-1 feature
    F_PAD = _round_up(F + 1, LANE)              # +1 bias feature (folds b1)
    H_PAD = _round_up(H + 1, LANE)              # +1 bias channel (folds b2)
    B_PAD = _round_up(B, B_TILE)
    n_tiles = B_PAD // B_TILE

    # One-time layout prep (plain XLA ops, outside the kernel).
    # Feature-major padded states with an always-1 bias feature row.
    s_p = (jnp.zeros((F_PAD, B_PAD), jnp.float32)
           .at[:F, :B].set(states.T)
           .at[F_BIAS, :B].set(1.0))
    # W1 augmented: b1 folded into the bias-feature column; row HIDDEN is the
    # bias channel that always evaluates to relu(1) == 1.
    w1_p = (jnp.zeros((H_PAD, F_PAD), jnp.float32)
            .at[:H, :F].set(w1)
            .at[:H, F_BIAS].set(b1)
            .at[H, F_BIAS].set(1.0))
    # W2 augmented row (b2 at the bias channel), replicated over 8 sublanes so
    # the head matmul directly produces an aligned (8, B_TILE) output tile.
    w2_row = (jnp.zeros((H_PAD,), jnp.float32)
              .at[:H].set(w2[0])
              .at[H].set(b2[0]))
    w2_p = jnp.broadcast_to(w2_row[None, :], (SUBLANE, H_PAD))

    out = pl.pallas_call(
        _critic_kernel,
        out_shape=jax.ShapeDtypeStruct((n_tiles * SUBLANE, B_TILE), jnp.float32),
        grid=(n_tiles,),
        in_specs=[
            # Batch tile marches along the lane (last) axis of the states.
            pl.BlockSpec((F_PAD, B_TILE), lambda i: (0, i)),
            # Weights: constant index_map -> DMA'd once, VMEM-resident.
            pl.BlockSpec((H_PAD, F_PAD), lambda i: (0, 0)),
            pl.BlockSpec((SUBLANE, H_PAD), lambda i: (0, 0)),
        ],
        out_specs=pl.BlockSpec((SUBLANE, B_TILE), lambda i: (i, 0)),
        compiler_params=pltpu.CompilerParams(
            dimension_semantics=("parallel",),   # v7x: split batch across 2 TCs
        ),
    )(s_p, w1_p, w2_p)

    # Each tile wrote its 128 values replicated over 8 sublanes; read sublane 0.
    vals = out.reshape(n_tiles, SUBLANE, B_TILE)[:, 0, :].reshape(B_PAD)
    return vals[:B, None]


def critic_forward(s, w1, b1, w2, b2):
    """Module-equivalent forward: flat state vector -> (1, 1) value (PyTorch s[None])."""
    return critic_forward_batched(jnp.asarray(s, jnp.float32)[None, :], w1, b1, w2, b2)


def init_params(key, n_features):
    """Deterministic init mimicking nn.Linear's uniform(-1/sqrt(fan_in), 1/sqrt(fan_in))."""
    k1, k2, k3, k4 = jax.random.split(key, 4)
    lim1 = 1.0 / jnp.sqrt(jnp.float32(n_features))
    lim2 = 1.0 / jnp.sqrt(jnp.float32(HIDDEN))
    w1 = jax.random.uniform(k1, (HIDDEN, n_features), jnp.float32, -lim1, lim1)
    b1 = jax.random.uniform(k2, (HIDDEN,), jnp.float32, -lim1, lim1)
    w2 = jax.random.uniform(k3, (1, HIDDEN), jnp.float32, -lim2, lim2)
    b2 = jax.random.uniform(k4, (1,), jnp.float32, -lim2, lim2)
    return w1, b1, w2, b2


if __name__ == "__main__":
    key = jax.random.PRNGKey(0)
    kp, ks1, ks2 = jax.random.split(key, 3)
    w1, b1, w2, b2 = init_params(kp, N_FEATURES)

    # 1) Module-equivalent single-state forward (PyTorch: s[None] -> (1, 1)).
    s = jax.random.normal(ks1, (N_FEATURES,), jnp.float32)
    out1 = jax.block_until_ready(critic_forward(s, w1, b1, w2, b2))
    ref1 = jnp.maximum(s[None, :] @ w1.T + b1[None, :], 0.0) @ w2.T + b2[None, :]
    assert out1.shape == (1, 1)
    assert jnp.allclose(out1, ref1, atol=1e-4, rtol=1e-4)

    # 2) Batched forward (the perf-relevant path): B=160 -> padded to 256, 2 grid tiles.
    B = 160
    sb = jax.random.normal(ks2, (B, N_FEATURES), jnp.float32)
    outB = jax.block_until_ready(critic_forward_batched(sb, w1, b1, w2, b2))
    refB = jnp.maximum(sb @ w1.T + b1[None, :], 0.0) @ w2.T + b2[None, :]
    assert outB.shape == (B, 1)
    assert jnp.allclose(outB, refB, atol=1e-4, rtol=1e-4)

    # TODO(synk): the `learn` method (Adam update / TD-error backward) is training
    # logic and is not part of the forward-pass kernel.
    print("KERNEL_OK")
</pallas_src>

<mosaic_0001>
module attributes {stable_mosaic.version = 11 : i64} {
  func.func @_critic_kernel(%arg0: i32, %arg1: memref<128x128xf32, #tpu.memory_space<vmem>>, %arg2: memref<128x128xf32, #tpu.memory_space<vmem>>, %arg3: memref<8x128xf32, #tpu.memory_space<vmem>>, %arg4: memref<8x128xf32, #tpu.memory_space<vmem>>) attributes {dimension_semantics = [#tpu.dimension_semantics<parallel>], iteration_bounds = array<i64: 1>, scalar_prefetch = 0 : i64, scratch_operands = 0 : i64, tpu.core_type = #tpu.core_type<tc>, window_params = [{transform_indices = @transform_0, window_bounds = array<i64: 128, 128>}, {pipeline_mode = #tpu.pipeline_mode<synchronous>, transform_indices = @transform_1, window_bounds = array<i64: 128, 128>}, {pipeline_mode = #tpu.pipeline_mode<synchronous>, transform_indices = @transform_2, window_bounds = array<i64: 8, 128>}, {transform_indices = @transform_3, window_bounds = array<i64: 8, 128>}]} {
    %c0 = arith.constant 0 : index
    %c0_0 = arith.constant 0 : index
    %0 = vector.load %arg2[%c0, %c0_0] : memref<128x128xf32, #tpu.memory_space<vmem>>, vector<128x128xf32>
    %c0_1 = arith.constant 0 : index
    %c0_2 = arith.constant 0 : index
    %1 = vector.load %arg1[%c0_1, %c0_2] : memref<128x128xf32, #tpu.memory_space<vmem>>, vector<128x128xf32>
    %cst = arith.constant dense<0.000000e+00> : vector<128x128xf32>
    %2 = tpu.matmul %0, %1, %cst {dimension_numbers = #tpu.dot_dimension_numbers<[1], [0], [0], [1], [0, 0, 1, 1], [], []>} : vector<128x128xf32>, vector<128x128xf32>, vector<128x128xf32> -> vector<128x128xf32>
    %cst_3 = arith.constant 0.000000e+00 : f32
    %3 = vector.broadcast %cst_3 : f32 to vector<128x128xf32>
    %4 = arith.maximumf %2, %3 : vector<128x128xf32>
    %c0_4 = arith.constant 0 : index
    %c0_5 = arith.constant 0 : index
    %5 = vector.load %arg3[%c0_4, %c0_5] : memref<8x128xf32, #tpu.memory_space<vmem>>, vector<8x128xf32>
    %cst_6 = arith.constant dense<0.000000e+00> : vector<8x128xf32>
    %6 = tpu.matmul %5, %4, %cst_6 {dimension_numbers = #tpu.dot_dimension_numbers<[1], [0], [0], [1], [0, 0, 1, 1], [], []>} : vector<8x128xf32>, vector<128x128xf32>, vector<8x128xf32> -> vector<8x128xf32>
    %c0_7 = arith.constant 0 : index
    %c0_8 = arith.constant 0 : index
    %7 = vector.load %arg4[%c0_7, %c0_8] : memref<8x128xf32, #tpu.memory_space<vmem>>, vector<8x128xf32>
    tpu.vector_store %arg4[%c0_7, %c0_8], %6 {strides = array<i32>} : memref<8x128xf32, #tpu.memory_space<vmem>>, vector<8x128xf32>,
    return
  }
  func.func @transform_0(%arg0: i32) -> (i32, i32) {
    %c0_i32 = arith.constant 0 : i32
    %c0_i32_0 = arith.constant 0 : i32
    return %c0_i32, %arg0 : i32, i32
  }
  func.func @transform_1(%arg0: i32) -> (i32, i32) {
    %c0_i32 = arith.constant 0 : i32
    %c0_i32_0 = arith.constant 0 : i32
    %c0_i32_1 = arith.constant 0 : i32
    return %c0_i32, %c0_i32_0 : i32, i32
  }
  func.func @transform_2(%arg0: i32) -> (i32, i32) {
    %c0_i32 = arith.constant 0 : i32
    %c0_i32_0 = arith.constant 0 : i32
    %c0_i32_1 = arith.constant 0 : i32
    return %c0_i32, %c0_i32_0 : i32, i32
  }
  func.func @transform_3(%arg0: i32) -> (i32, i32) {
    %c0_i32 = arith.constant 0 : i32
    %c0_i32_0 = arith.constant 0 : i32
    return %arg0, %c0_i32 : i32, i32
  }
}

</mosaic_0001>

<llo_original>
// kernel: tpu_custom_call.1
$region0: #{tpu_custom_call.1}
  #allocation0 [shape = 'u32[]', space=smem, size = 0x4, offset = 0x4, fixed_abs, tag = 'smem constant byte address 0x4 - core index']
  #allocation1 [shape = 'u32[144,128]{1,0:T(1,128)}', space=vmem, size = 0x12000, scoped, tag = 'internal scratch']
  %s0 = inlined_call_operand.hbm [shape: f32[128,128], index: 0, kind: input, shape index: {}]
  %s1 = inlined_call_operand.hbm [shape: f32[128,128], index: 1, kind: input, shape index: {}]
  %s2 = inlined_call_operand.hbm [shape: f32[8,128], index: 2, kind: input, shape index: {}]
  %s3 = inlined_call_operand.hbm [shape: f32[8,128], index: 3, kind: output, shape index: {}]
  %s4 = sld [smem:[#allocation0]]
  $region34: #{tpu_custom_call.1} parent=0
    _
  %s6 = ssub.s32 1, %s4
  %s7 = scalar_select 0, %s6, %s4
  $region1: #{tpu_custom_call.1} parent=0
    #allocation2 [shape = 'u8[65536]{0}', space=vmem, size = 0x10000, scoped, tag = 'input window, operand 0, single buffered']
    #allocation3 [shape = 's32[1]{0}', space=sflag, size = 0x4, scoped, tag = 'scoped memory for tpu_custom_call.1']
    #allocation4 [shape = 's32[1]{0}', space=sflag, size = 0x4, scoped, tag = 'scoped memory for tpu_custom_call.1']
    #allocation5 [shape = 'u8[65536]{0}', space=vmem, size = 0x10000, scoped, tag = 'input window, operand 1, single buffered']
    #allocation6 [shape = 's32[1]{0}', space=sflag, size = 0x4, scoped, tag = 'scoped memory for tpu_custom_call.1']
    #allocation7 [shape = 'u8[4096]{0}', space=vmem, size = 0x1000, scoped, tag = 'input window, operand 2, single buffered']
    #allocation8 [shape = 'u8[4096]{0}', space=vmem, size = 0x1000, scoped, tag = 'output window, operand 0, single buffered']
    %8 = vsyncpa [#allocation3], 0
    %9 = vsyncpa [#allocation6], 0
    %10 = vsyncpa [#allocation4], 0
    // Predicated region
    $region2: #{tpu_custom_call.1} parent=1 // pred_check
      _
    $region3: #{tpu_custom_call.1} parent=1 // pred_check_branch
      %12 = sbr.rel (0) target = $region5
    $region4: #{tpu_custom_call.1} parent=1 // pred_region
      %s14 = ssub.s32 2048, 2048
      %15 = vsyncadd [#allocation3], %s14
      %s16 = sshll.u32 [#allocation2], 4
      %s17 = int_to_ptr.vmem [resolvable:$true] %s16
      %22 = dma.hbm_to_vmem [thread:$0]  %s0, 2048, %s17, [#allocation3], 128, 128, 8
    $region5: #{tpu_custom_call.1} parent=1 // pred_fallthru
      _
    // Predicated region
    $region6: #{tpu_custom_call.1} parent=1 // pred_check
      _
    $region7: #{tpu_custom_call.1} parent=1 // pred_check_branch
      %24 = sbr.rel (0) target = $region9
    $region8: #{tpu_custom_call.1} parent=1 // pred_region
      %s26 = ssub.s32 2048, 2048
      %27 = vsyncadd [#allocation6], %s26
      %s28 = sshll.u32 [#allocation5], 4
      %s29 = int_to_ptr.vmem [resolvable:$true] %s28
      %34 = dma.hbm_to_vmem [thread:$0]  %s1, 2048, %s29, [#allocation6], 128, 128, 8
    $region9: #{tpu_custom_call.1} parent=1 // pred_fallthru
      _
    // Predicated region
    $region10: #{tpu_custom_call.1} parent=1 // pred_check
      _
    $region11: #{tpu_custom_call.1} parent=1 // pred_check_branch
      %36 = sbr.rel (0) target = $region13
    $region12: #{tpu_custom_call.1} parent=1 // pred_region
      %s38 = ssub.s32 128, 128
      %39 = vsyncadd [#allocation6], %s38
      %s41 = sshll.u32 [#allocation7], 4
      %s42 = int_to_ptr.vmem [resolvable:$true] %s41
      %44 = dma.hbm_to_vmem [thread:$0]  %s2, 128, %s42, [#allocation6]
    $region13: #{tpu_custom_call.1} parent=1 // pred_fallthru
      _
    // Predicated region
    $region14: #{tpu_custom_call.1} parent=1 // pred_check
      _
    $region15: #{tpu_custom_call.1} parent=1 // pred_check_branch
      %46 = sbr.rel (0) target = $region17
    $region16: #{tpu_custom_call.1} parent=1 // pred_region
      %47 = dma.done [#allocation3], 2048
    $region17: #{tpu_custom_call.1} parent=1 // pred_fallthru
      _
    // Predicated region
    $region18: #{tpu_custom_call.1} parent=1 // pred_check
      _
    $region19: #{tpu_custom_call.1} parent=1 // pred_check_branch
      %49 = sbr.rel (0) target = $region21
    $region20: #{tpu_custom_call.1} parent=1 // pred_region
      %50 = dma.done [#allocation6], 2048
    $region21: #{tpu_custom_call.1} parent=1 // pred_fallthru
      _
    // Predicated region
    $region22: #{tpu_custom_call.1} parent=1 // pred_check
      _
    $region23: #{tpu_custom_call.1} parent=1 // pred_check_branch
      %52 = sbr.rel (0) target = $region25
    $region24: #{tpu_custom_call.1} parent=1 // pred_region
      %53 = dma.done [#allocation6], 128
    $region25: #{tpu_custom_call.1} parent=1 // pred_fallthru
      _
    %v54 = vld [vmem:[#allocation5] sm:$0xff]
    %v55 = vld [vmem:[#allocation5 + $0x8] sm:$0xff]
    %v56 = vld [vmem:[#allocation5 + $0x10] sm:$0xff]
    %v57 = vld [vmem:[#allocation5 + $0x18] sm:$0xff]
    %v58 = vld [vmem:[#allocation5 + $0x20] sm:$0xff]
    %v59 = vld [vmem:[#allocation5 + $0x28] sm:$0xff]
    %v60 = vld [vmem:[#allocation5 + $0x30] sm:$0xff]
    %v61 = vld [vmem:[#allocation5 + $0x38] sm:$0xff]
    %v62 = vld [vmem:[#allocation5 + $0x40] sm:$0xff]
    %v63 = vld [vmem:[#allocation5 + $0x48] sm:$0xff]
    %v64 = vld [vmem:[#allocation5 + $0x50] sm:$0xff]
    %v65 = vld [vmem:[#allocation5 + $0x58] sm:$0xff]
    %v66 = vld [vmem:[#allocation5 + $0x60] sm:$0xff]
    %v67 = vld [vmem:[#allocation5 + $0x68] sm:$0xff]
    %v68 = vld [vmem:[#allocation5 + $0x70] sm:$0xff]
    %v69 = vld [vmem:[#allocation5 + $0x78] sm:$0xff]
    %v70 = vld [vmem:[#allocation2] sm:$0xff]
    %v71 = vld [vmem:[#allocation2 + $0x8] sm:$0xff]
    %v72 = vld [vmem:[#allocation2 + $0x10] sm:$0xff]
    %v73 = vld [vmem:[#allocation2 + $0x18] sm:$0xff]
    %v74 = vld [vmem:[#allocation2 + $0x20] sm:$0xff]
    %v75 = vld [vmem:[#allocation2 + $0x28] sm:$0xff]
    %v76 = vld [vmem:[#allocation2 + $0x30] sm:$0xff]
    %v77 = vld [vmem:[#allocation2 + $0x38] sm:$0xff]
    %v78 = vld [vmem:[#allocation2 + $0x40] sm:$0xff]
    %v79 = vld [vmem:[#allocation2 + $0x48] sm:$0xff]
    %v80 = vld [vmem:[#allocation2 + $0x50] sm:$0xff]
    %v81 = vld [vmem:[#allocation2 + $0x58] sm:$0xff]
    %v82 = vld [vmem:[#allocation2 + $0x60] sm:$0xff]
    %v83 = vld [vmem:[#allocation2 + $0x68] sm:$0xff]
    %v84 = vld [vmem:[#allocation2 + $0x70] sm:$0xff]
    %v85 = vld [vmem:[#allocation2 + $0x78] sm:$0xff]
    %86 = vmatprep.subr.mxu0 0.0
    %87 = vmatpush1.msra.mxu0 %v70
    %88 = vmatprep.subr.mxu0 0.0
    %89 = vmatpush1.msra.mxu0 %v71
    %90 = vmatprep.subr.mxu0 0.0
    %91 = vmatpush1.msra.mxu0 %v72
    %92 = vmatprep.subr.mxu0 0.0
    %93 = vmatpush1.msra.mxu0 %v73
    %94 = vmatprep.subr.mxu0 0.0
    %95 = vmatpush1.msra.mxu0 %v74
    %96 = vmatprep.subr.mxu0 0.0
    %97 = vmatpush1.msra.mxu0 %v75
    %98 = vmatprep.subr.mxu0 0.0
    %99 = vmatpush1.msra.mxu0 %v76
    %100 = vmatprep.subr.mxu0 0.0
    %101 = vmatpush1.msra.mxu0 %v77
    %102 = vmatprep.subr.mxu0 0.0
    %103 = vmatpush1.msra.mxu0 %v78
    %104 = vmatprep.subr.mxu0 0.0
    %105 = vmatpush1.msra.mxu0 %v79
    %106 = vmatprep.subr.mxu0 0.0
    %107 = vmatpush1.msra.mxu0 %v80
    %108 = vmatprep.subr.mxu0 0.0
    %109 = vmatpush1.msra.mxu0 %v81
    %110 = vmatprep.subr.mxu0 0.0
    %111 = vmatpush1.msra.mxu0 %v82
    %112 = vmatprep.subr.mxu0 0.0
    %113 = vmatpush1.msra.mxu0 %v83
    %114 = vmatprep.subr.mxu0 0.0
    %115 = vmatpush1.msra.mxu0 %v84
    %116 = vmatprep.subr.mxu0 0.0
    %117 = vmatpush1.msra.mxu0 %v85
    %118 = vmatprep.subr.mxu0 0.0
    %119 = vmatpush1.msra.mxu0 0.0
    %120 = vmatprep.subr.mxu0 0.0
    %121 = vmatpush1.msra.mxu0 0.0
    %122 = vmatprep.subr.mxu0 0.0
    %123 = vmatpush1.msra.mxu0 0.0
    %124 = vmatprep.subr.mxu0 0.0
    %125 = vmatpush1.msra.mxu0 0.0
    %126 = vmatprep.subr.mxu0 0.0
    %127 = vmatpush1.msra.mxu0 0.0
    %128 = vmatprep.subr.mxu0 0.0
    %129 = vmatpush1.msra.mxu0 0.0
    %130 = vmatprep.subr.mxu0 0.0
    %131 = vmatpush1.msra.mxu0 0.0
    %132 = vmatprep.subr.mxu0 0.0
    %133 = vmatpush1.msra.mxu0 0.0
    %134 = vmatprep.subr.mxu0 0.0
    %135 = vmatpush1.msra.mxu0 0.0
    %136 = vmatprep.subr.mxu0 0.0
    %137 = vmatpush1.msra.mxu0 0.0
    %138 = vmatprep.subr.mxu0 0.0
    %139 = vmatpush1.msra.mxu0 0.0
    %140 = vmatprep.subr.mxu0 0.0
    %141 = vmatpush1.msra.mxu0 0.0
    %142 = vmatprep.subr.mxu0 0.0
    %143 = vmatpush1.msra.mxu0 0.0
    %144 = vmatprep.subr.mxu0 0.0
    %145 = vmatpush1.msra.mxu0 0.0
    %146 = vmatprep.subr.mxu0 0.0
    %147 = vmatpush1.msra.mxu0 0.0
    %148 = vmatprep.subr.mxu0 0.0
    %149 = vmatpush1.msra.mxu0 0.0
    %150 = vmatprep.mubr.f32.mxu0 0.0
    %151 = vmatmul.mubr.f32.gmra.mrb[0].mxu0 %v54
    %v152 = vpop.f32.mrb[0].mxu0
    %v153 = vadd.f32 0.0, %v152
    %v154 = vpop.f32.mrb[0].mxu0
    %155 = vmatprep.mubr.f32.mxu0 0.0
    %156 = vmatmul.mubr.f32.gmra.mrb[0].mxu0 %v55
    %v157 = vpop.f32.mrb[0].mxu0
    %v158 = vadd.f32 0.0, %v157
    %v159 = vpop.f32.mrb[0].mxu0
    %160 = vmatprep.mubr.f32.mxu0 0.0
    %161 = vmatmul.mubr.f32.gmra.mrb[0].mxu0 %v56
    %v162 = vpop.f32.mrb[0].mxu0
    %v163 = vadd.f32 0.0, %v162
    %v164 = vpop.f32.mrb[0].mxu0
    %165 = vmatprep.mubr.f32.mxu0 0.0
    %166 = vmatmul.mubr.f32.gmra.mrb[0].mxu0 %v57
    %v167 = vpop.f32.mrb[0].mxu0
    %v168 = vadd.f32 0.0, %v167
    %v169 = vpop.f32.mrb[0].mxu0
    %170 = vmatprep.mubr.f32.mxu0 0.0
    %171 = vmatmul.mubr.f32.gmra.mrb[0].mxu0 %v58
    %v172 = vpop.f32.mrb[0].mxu0
    %v173 = vadd.f32 0.0, %v172
    %v174 = vpop.f32.mrb[0].mxu0
    %175 = vmatprep.mubr.f32.mxu0 0.0
    %176 = vmatmul.mubr.f32.gmra.mrb[0].mxu0 %v59
    %v177 = vpop.f32.mrb[0].mxu0
    %v178 = vadd.f32 0.0, %v177
    %v179 = vpop.f32.mrb[0].mxu0
    %180 = vmatprep.mubr.f32.mxu0 0.0
    %181 = vmatmul.mubr.f32.gmra.mrb[0].mxu0 %v60
    %v182 = vpop.f32.mrb[0].mxu0
    %v183 = vadd.f32 0.0, %v182
    %v184 = vpop.f32.mrb[0].mxu0
    %185 = vmatprep.mubr.f32.mxu0 0.0
    %186 = vmatmul.mubr.f32.gmra.mrb[0].mxu0 %v61
    %v187 = vpop.f32.mrb[0].mxu0
    %v188 = vadd.f32 0.0, %v187
    %v189 = vpop.f32.mrb[0].mxu0
    %190 = vmatprep.mubr.f32.mxu0 0.0
    %191 = vmatmul.mubr.f32.gmra.mrb[0].mxu0 %v62
    %v192 = vpop.f32.mrb[0].mxu0
    %v193 = vadd.f32 0.0, %v192
    %v194 = vpop.f32.mrb[0].mxu0
    %195 = vmatprep.mubr.f32.mxu0 0.0
    %196 = vmatmul.mubr.f32.gmra.mrb[0].mxu0 %v63
    %v197 = vpop.f32.mrb[0].mxu0
    %v198 = vadd.f32 0.0, %v197
    %v199 = vpop.f32.mrb[0].mxu0
    %200 = vmatprep.mubr.f32.mxu0 0.0
    %201 = vmatmul.mubr.f32.gmra.mrb[0].mxu0 %v64
    %v202 = vpop.f32.mrb[0].mxu0
    %v203 = vadd.f32 0.0, %v202
    %v204 = vpop.f32.mrb[0].mxu0
    %205 = vmatprep.mubr.f32.mxu0 0.0
    %206 = vmatmul.mubr.f32.gmra.mrb[0].mxu0 %v65
    %v207 = vpop.f32.mrb[0].mxu0
    %v208 = vadd.f32 0.0, %v207
    %v209 = vpop.f32.mrb[0].mxu0
    %210 = vmatprep.mubr.f32.mxu0 0.0
    %211 = vmatmul.mubr.f32.gmra.mrb[0].mxu0 %v66
    %v212 = vpop.f32.mrb[0].mxu0
    %v213 = vadd.f32 0.0, %v212
    %v214 = vpop.f32.mrb[0].mxu0
    %215 = vmatprep.mubr.f32.mxu0 0.0
    %216 = vmatmul.mubr.f32.gmra.mrb[0].mxu0 %v67
    %v217 = vpop.f32.mrb[0].mxu0
    %v218 = vadd.f32 0.0, %v217
    %v219 = vpop.f32.mrb[0].mxu0
    %220 = vmatprep.mubr.f32.mxu0 0.0
    %221 = vmatmul.mubr.f32.gmra.mrb[0].mxu0 %v68
    %v222 = vpop.f32.mrb[0].mxu0
    %v223 = vadd.f32 0.0, %v222
    %v224 = vpop.f32.mrb[0].mxu0
    %225 = vmatprep.mubr.f32.mxu0 0.0
    %226 = vmatmul.mubr.f32.gmra.mrb[0].mxu0 %v69
    %v227 = vpop.f32.mrb[0].mxu0
    %v228 = vadd.f32 0.0, %v227
    %v229 = vpop.f32.mrb[0].mxu0
    %230 = vdwg.mxu0
    %v231 = vmax.f32 %v153, 0.0
    %v232 = vmax.f32 %v158, 0.0
    %v233 = vmax.f32 %v163, 0.0
    %v234 = vmax.f32 %v168, 0.0
    %v235 = vmax.f32 %v173, 0.0
    %v236 = vmax.f32 %v178, 0.0
    %v237 = vmax.f32 %v183, 0.0
    %v238 = vmax.f32 %v188, 0.0
    %v239 = vmax.f32 %v193, 0.0
    %v240 = vmax.f32 %v198, 0.0
    %v241 = vmax.f32 %v203, 0.0
    %v242 = vmax.f32 %v208, 0.0
    %v243 = vmax.f32 %v213, 0.0
    %v244 = vmax.f32 %v218, 0.0
    %v245 = vmax.f32 %v223, 0.0
    %v246 = vmax.f32 %v228, 0.0
    %v247 = vld [vmem:[#allocation7] sm:$0xff]
    %248 = vmatprep.subr.mxu0 0.0
    %249 = vmatpush1.msra.mxu0 %v231
    %250 = vmatprep.subr.mxu0 0.0
    %251 = vmatpush1.msra.mxu0 %v232
    %252 = vmatprep.subr.mxu0 0.0
    %253 = vmatpush1.msra.mxu0 %v233
    %254 = vmatprep.subr.mxu0 0.0
    %255 = vmatpush1.msra.mxu0 %v234
    %256 = vmatprep.subr.mxu0 0.0
    %257 = vmatpush1.msra.mxu0 %v235
    %258 = vmatprep.subr.mxu0 0.0
    %259 = vmatpush1.msra.mxu0 %v236
    %260 = vmatprep.subr.mxu0 0.0
    %261 = vmatpush1.msra.mxu0 %v237
    %262 = vmatprep.subr.mxu0 0.0
    %263 = vmatpush1.msra.mxu0 %v238
    %264 = vmatprep.subr.mxu0 0.0
    %265 = vmatpush1.msra.mxu0 %v239
    %266 = vmatprep.subr.mxu0 0.0
    %267 = vmatpush1.msra.mxu0 %v240
    %268 = vmatprep.subr.mxu0 0.0
    %269 = vmatpush1.msra.mxu0 %v241
    %270 = vmatprep.subr.mxu0 0.0
    %271 = vmatpush1.msra.mxu0 %v242
    %272 = vmatprep.subr.mxu0 0.0
    %273 = vmatpush1.msra.mxu0 %v243
    %274 = vmatprep.subr.mxu0 0.0
    %275 = vmatpush1.msra.mxu0 %v244
    %276 = vmatprep.subr.mxu0 0.0
    %277 = vmatpush1.msra.mxu0 %v245
    %278 = vmatprep.subr.mxu0 0.0
    %279 = vmatpush1.msra.mxu0 %v246
    %280 = vmatprep.subr.mxu0 0.0
    %281 = vmatpush1.msra.mxu0 0.0
    %282 = vmatprep.subr.mxu0 0.0
    %283 = vmatpush1.msra.mxu0 0.0
    %284 = vmatprep.subr.mxu0 0.0
    %285 = vmatpush1.msra.mxu0 0.0
    %286 = vmatprep.subr.mxu0 0.0
    %287 = vmatpush1.msra.mxu0 0.0
    %288 = vmatprep.subr.mxu0 0.0
    %289 = vmatpush1.msra.mxu0 0.0
    %290 = vmatprep.subr.mxu0 0.0
    %291 = vmatpush1.msra.mxu0 0.0
    %292 = vmatprep.subr.mxu0 0.0
    %293 = vmatpush1.msra.mxu0 0.0
    %294 = vmatprep.subr.mxu0 0.0
    %295 = vmatpush1.msra.mxu0 0.0
    %296 = vmatprep.subr.mxu0 0.0
    %297 = vmatpush1.msra.mxu0 0.0
    %298 = vmatprep.subr.mxu0 0.0
    %299 = vmatpush1.msra.mxu0 0.0
    %300 = vmatprep.subr.mxu0 0.0
    %301 = vmatpush1.msra.mxu0 0.0
    %302 = vmatprep.subr.mxu0 0.0
    %303 = vmatpush1.msra.mxu0 0.0
    %304 = vmatprep.subr.mxu0 0.0
    %305 = vmatpush1.msra.mxu0 0.0
    %306 = vmatprep.subr.mxu0 0.0
    %307 = vmatpush1.msra.mxu0 0.0
    %308 = vmatprep.subr.mxu0 0.0
    %309 = vmatpush1.msra.mxu0 0.0
    %310 = vmatprep.subr.mxu0 0.0
    %311 = vmatpush1.msra.mxu0 0.0
    %312 = vmatprep.mubr.f32.mxu0 0.0
    %313 = vmatmul.mubr.f32.gmra.mrb[0].mxu0 %v247
    %v314 = vpop.f32.mrb[0].mxu0
    %v315 = vadd.f32 0.0, %v314
    %v316 = vpop.f32.mrb[0].mxu0
    %317 = vdwg.mxu0
    %318 = vst [vmem:[#allocation8] sm:$0xff] %v315
    // Predicated region
    $region26: #{tpu_custom_call.1} parent=1 // pred_check
      _
    $region27: #{tpu_custom_call.1} parent=1 // pred_check_branch
      %320 = sbr.rel (0) target = $region29
    $region28: #{tpu_custom_call.1} parent=1 // pred_region
      %s322 = ssub.s32 128, 128
      %323 = vsyncadd [#allocation4], %s322
      %s325 = sshll.u32 [#allocation8], 4
      %s326 = int_to_ptr.vmem [resolvable:$true] %s325
      %328 = dma.vmem_to_hbm [thread:$0]  %s326, 128, %s3, [#allocation4]
    $region29: #{tpu_custom_call.1} parent=1 // pred_fallthru
      _
    // Predicated region
    $region30: #{tpu_custom_call.1} parent=1 // pred_check
      _
    $region31: #{tpu_custom_call.1} parent=1 // pred_check_branch
      %330 = sbr.rel (0) target = $region33
    $region32: #{tpu_custom_call.1} parent=1 // pred_region
      %331 = dma.done [#allocation4], 128
    $region33: #{tpu_custom_call.1} parent=1 // pred_fallthru
      _
    %332 = vsyncpa [#allocation3], 1
    %333 = vsyncpa [#allocation6], 1
    %334 = vsyncpa [#allocation4], 1

</llo_original>
